<compile_context>
chip_gen: v6e
topology: v6e:2x2x1
jax: 0.10.0
libtpu: 0.0.40
codegen_flags: <defaults>
</compile_context>

<pallas_src>
import numpy as np

import jax
import jax.numpy as jnp
from jax.experimental import pallas as pl
from jax.experimental.pallas import tpu as pltpu


# --------------------------------------------------------------------------
# Host-side construction of the per-axis (antialiased resize + center-crop)
# matrices.
# TODO(synk): the random scale sampling, round() to dynamic resize sizes and
# the triangle-filter weight construction are host-side scalar work with
# data-dependent intermediate sizes; only the per-pixel resample runs in Pallas.
# --------------------------------------------------------------------------
def _resize_then_center_crop_matrix(size, resized):
    """M (size, size) such that M @ v == center_crop(resize_aa(v, resized), size)
    along one axis, where resize_aa is the PIL/torchvision antialiased linear
    (triangle-filter) resize used by TF.resize(..., BILINEAR, antialias=True)."""
    in_size = int(size)
    out_size = max(1, int(resized))

    w = np.zeros((out_size, in_size), dtype=np.float64)
    scale = in_size / out_size
    filterscale = max(scale, 1.0)      # antialias widens the kernel when downscaling
    support = 1.0 * filterscale        # triangle filter support
    inv_fs = 1.0 / filterscale
    for i in range(out_size):
        center = (i + 0.5) * scale
        xmin = max(int(center - support + 0.5), 0)
        xmax = min(int(center + support + 0.5), in_size)
        total = 0.0
        for x in range(xmin, xmax):
            val = max(0.0, 1.0 - abs((x - center + 0.5) * inv_fs))
            w[i, x] = val
            total += val
        if total > 0.0:
            w[i, xmin:xmax] /= total

    # Fold torchvision center_crop: crop if the resized axis is larger, zero-pad
    # if it is smaller.
    m = np.zeros((in_size, in_size), dtype=np.float64)
    if out_size >= in_size:
        top = int(round((out_size - in_size) / 2.0))
        m[:, :] = w[top:top + in_size, :]
    else:
        pad_before = (in_size - out_size) // 2
        m[pad_before:pad_before + out_size, :] = w
    return m.astype(np.float32)


def sample_stretch_matrices(key, gamma_x, gamma_y, height, width):
    """Sample per-call random scales (torch.rand(2)*2-1 semantics) and build A, B."""
    rand = np.asarray(jax.random.uniform(key, (2,), minval=-1.0, maxval=1.0))
    scale_x = 1.0 + float(gamma_x) * float(rand[0])
    scale_y = 1.0 + float(gamma_y) * float(rand[1])
    resized_h = round(height * scale_y)     # same rounding as the torch module
    resized_w = round(width * scale_x)
    row_mat = _resize_then_center_crop_matrix(height, resized_h)   # (H, H)
    col_mat = _resize_then_center_crop_matrix(width, resized_w)    # (W, W)
    return row_mat, col_mat


# --------------------------------------------------------------------------
# Tiling / dtype helpers.
# --------------------------------------------------------------------------
_VMEM_LIMIT_BYTES = 32 << 20     # explicit: > v5e's 16 MiB default scoped limit,
                                 # == v7x default (64 MiB physical).
_BLOCK_TARGET_BYTES = 4 << 20    # input bytes per block; true per-step footprint
                                 # ~= 5x this (2x in + 2x out + f32 intermediate).
_KRON_MAX_PIXELS = 1024          # fused path only while kron weight <= 4 MiB f32.


def _pick_batch_tile(nb, row_bytes, target_bytes=_BLOCK_TARGET_BYTES, min_steps=4):
    """Rows per block: ~target_bytes of input per block, >= min_steps grid steps
    when the batch allows it (pipelining; >=2 steps per TC on v7x megacore),
    and sublane-aligned (multiple of 8) partial blocks."""
    bt = max(1, int(target_bytes) // max(int(row_bytes), 1))
    if bt * min_steps > nb:
        bt = max(1, nb // min_steps)
    bt = min(bt, nb)
    if bt < nb:
        bt = min(max(8, (bt // 8) * 8), nb)
    return bt


def _weight_dtype(img_dtype):
    # bf16 images -> bf16 weights (MXU-native everywhere, mandatory win on v5e);
    # everything else computes through f32 weights.
    return jnp.bfloat16 if img_dtype == jnp.bfloat16 else jnp.float32


def _finalize(y, out_dtype):
    """Cast the f32 accumulator to the output dtype (round+clip for integers)."""
    if jnp.issubdtype(out_dtype, jnp.integer):
        info = jnp.iinfo(out_dtype)
        y = jnp.clip(jnp.round(y), info.min, info.max)
    return y.astype(out_dtype)


# --------------------------------------------------------------------------
# Fused path (small images): out2[n, :] = x2[n, :] @ kron(A, B)^T
# One flat, lane-dense MXU matmul per block.  No broadcasts, no up-casts.
# --------------------------------------------------------------------------
def _stretch_fused_kernel(m_ref, x_ref, o_ref):
    x = x_ref[...]
    if not jnp.issubdtype(x_ref.dtype, jnp.floating):
        x = x.astype(jnp.float32)          # only integer images get up-cast
    y = jnp.dot(x, m_ref[...], preferred_element_type=jnp.float32)
    o_ref[...] = _finalize(y, o_ref.dtype)


def _apply_stretch_fused(x2, row_mat, col_mat):
    nb, hw = x2.shape
    wdtype = _weight_dtype(x2.dtype)
    # Pre-transposed kron weight: out2 = x2 @ M with M[h*W+w, u*W+v] = A[u,h]*B[v,w].
    m = jnp.asarray(np.kron(row_mat, col_mat).T, wdtype)

    itemsize = jnp.dtype(x2.dtype).itemsize
    weight_bytes = hw * hw * jnp.dtype(wdtype).itemsize
    # VMEM budget: 2x in + 2x out + f32 intermediate + 2x weight  <= ~24 MiB.
    target = max(1 << 20, ((20 << 20) - 2 * weight_bytes) // 5)
    bt = _pick_batch_tile(nb, hw * itemsize, target_bytes=target)
    grid = (pl.cdiv(nb, bt),)

    cost = pl.CostEstimate(
        flops=2 * nb * hw * hw,
        transcendentals=0,
        bytes_accessed=2 * nb * hw * itemsize + weight_bytes,
    )

    return pl.pallas_call(
        _stretch_fused_kernel,
        out_shape=jax.ShapeDtypeStruct((nb, hw), x2.dtype),
        grid=grid,
        in_specs=[
            pl.BlockSpec((hw, hw), lambda i: (0, 0)),     # kron weight (shared)
            pl.BlockSpec((bt, hw), lambda i: (i, 0)),     # image rows, lane-dense
        ],
        out_specs=pl.BlockSpec((bt, hw), lambda i: (i, 0)),
        compiler_params=pltpu.CompilerParams(
            dimension_semantics=("parallel",),            # batch shards across TCs (v7x)
            vmem_limit_bytes=_VMEM_LIMIT_BYTES,
        ),
        cost_estimate=cost,
    )(m, x2)


# --------------------------------------------------------------------------
# Separable fallback (large images): width contraction as one flat matmul,
# height contraction as a static per-image loop (A reused, never broadcast).
# --------------------------------------------------------------------------
def _stretch_separable_kernel(a_ref, bt_ref, x_ref, o_ref, t_ref):
    btile, h, w = x_ref.shape
    x = x_ref[...]
    if not jnp.issubdtype(x_ref.dtype, jnp.floating):
        x = x.astype(jnp.float32)
    # Width contraction: ONE flat matmul, M = btile*H, shared weight B^T.
    t_ref[...] = jnp.dot(
        x.reshape(btile * h, w), bt_ref[...],
        preferred_element_type=jnp.float32).reshape(btile, h, w)
    a = a_ref[...].astype(jnp.float32)
    # TODO(synk): a fully flat H-contraction needs an (H, nb, W) data layout
    # (extra transpose passes); kept as per-image matmuls for the large-image path.
    for n in range(btile):
        o_ref[n] = _finalize(
            jnp.dot(a, t_ref[n], preferred_element_type=jnp.float32), o_ref.dtype)


def _apply_stretch_separable(x3, row_mat, col_mat):
    nb, h, w = x3.shape
    wdtype = _weight_dtype(x3.dtype)
    a = jnp.asarray(row_mat, wdtype)          # (H, H)
    b_t = jnp.asarray(col_mat.T, wdtype)      # (W, W), pre-transposed

    itemsize = jnp.dtype(x3.dtype).itemsize
    bt = _pick_batch_tile(nb, h * w * itemsize)
    grid = (pl.cdiv(nb, bt),)

    cost = pl.CostEstimate(
        flops=2 * nb * h * w * (h + w),
        transcendentals=0,
        bytes_accessed=2 * nb * h * w * itemsize + (h * h + w * w) * 4,
    )

    return pl.pallas_call(
        _stretch_separable_kernel,
        out_shape=jax.ShapeDtypeStruct((nb, h, w), x3.dtype),
        grid=grid,
        in_specs=[
            pl.BlockSpec((h, h), lambda i: (0, 0)),
            pl.BlockSpec((w, w), lambda i: (0, 0)),
            pl.BlockSpec((bt, h, w), lambda i: (i, 0, 0)),
        ],
        out_specs=pl.BlockSpec((bt, h, w), lambda i: (i, 0, 0)),
        scratch_shapes=[pltpu.VMEM((bt, h, w), jnp.float32)],
        compiler_params=pltpu.CompilerParams(
            dimension_semantics=("parallel",),
            vmem_limit_bytes=_VMEM_LIMIT_BYTES,
        ),
        cost_estimate=cost,
    )(a, b_t, x3)


# --------------------------------------------------------------------------
# Public wrappers.
# --------------------------------------------------------------------------
def apply_stretch(img, row_mat, col_mat):
    """out[..., u, v] = sum_{h,w} row_mat[u,h] * img[..., h, w] * col_mat[v,w]."""
    orig_shape = img.shape
    h, w = orig_shape[-2:]
    nb = int(np.prod(orig_shape[:-2], dtype=np.int64)) if len(orig_shape) > 2 else 1
    if h * w <= _KRON_MAX_PIXELS:
        out = _apply_stretch_fused(img.reshape(nb, h * w), row_mat, col_mat)
    else:
        out = _apply_stretch_separable(img.reshape(nb, h, w), row_mat, col_mat)
    return out.reshape(orig_shape)        # free reshapes only, no padding / copies


def random_stretch_transform(img, gamma_x, gamma_y, key):
    """Forward pass of RandomStretchTransform on an NCHW (or ...HW) image batch."""
    h, w = img.shape[-2:]
    row_mat, col_mat = sample_stretch_matrices(key, gamma_x, gamma_y, h, w)
    return apply_stretch(img, row_mat, col_mat)


if __name__ == "__main__":
    # Deterministic "module init": gammas from __init__.
    gamma_x, gamma_y = 0.3, 0.3

    key = jax.random.PRNGKey(0)
    k_img, k_rand = jax.random.split(key)
    x = jax.random.uniform(k_img, (2, 4, 16, 16), dtype=jnp.float32)   # NCHW

    out = random_stretch_transform(x, gamma_x, gamma_y, k_rand)
    out = jax.block_until_ready(out)

    # Reference: same sampled matrices (same key -> identical draw), exact float64.
    A, B = sample_stretch_matrices(k_rand, gamma_x, gamma_y, 16, 16)
    ref = np.einsum('uh,nchw,vw->ncuv',
                    A.astype(np.float64), np.asarray(x, np.float64),
                    B.astype(np.float64))

    assert out.shape == x.shape and out.dtype == x.dtype
    # Tolerance sized for TPU default matmul precision (f32 operands may take a
    # bf16 pass on the MXU); outputs are O(1), a real bug would be O(0.1-1) off.
    err = float(jnp.max(jnp.abs(out - jnp.asarray(ref, jnp.float32))))
    assert err < 2e-2, f"max abs err {err}"
    print("KERNEL_OK")
</pallas_src>

<mosaic_0001>
module attributes {stable_mosaic.version = 11 : i64} {
  func.func @_stretch_fused_kernel(%arg0: i32, %arg1: memref<256x256xf32, #tpu.memory_space<vmem>>, %arg2: memref<8x256xf32, #tpu.memory_space<vmem>>, %arg3: memref<8x256xf32, #tpu.memory_space<vmem>>) attributes {dimension_semantics = [#tpu.dimension_semantics<parallel>], iteration_bounds = array<i64: 1>, scalar_prefetch = 0 : i64, scratch_operands = 0 : i64, tpu.core_type = #tpu.core_type<tc>, window_params = [{pipeline_mode = #tpu.pipeline_mode<synchronous>, transform_indices = @transform_0, window_bounds = array<i64: 256, 256>}, {transform_indices = @transform_1, window_bounds = array<i64: 8, 256>}, {transform_indices = @transform_2, window_bounds = array<i64: 8, 256>}]} {
    %c0 = arith.constant 0 : index
    %c0_0 = arith.constant 0 : index
    %0 = vector.load %arg2[%c0, %c0_0] : memref<8x256xf32, #tpu.memory_space<vmem>>, vector<8x256xf32>
    %c0_1 = arith.constant 0 : index
    %c0_2 = arith.constant 0 : index
    %1 = vector.load %arg1[%c0_1, %c0_2] : memref<256x256xf32, #tpu.memory_space<vmem>>, vector<256x256xf32>
    %cst = arith.constant dense<0.000000e+00> : vector<8x256xf32>
    %2 = tpu.matmul %0, %1, %cst {dimension_numbers = #tpu.dot_dimension_numbers<[1], [0], [0], [1], [0, 0, 1, 1], [], []>} : vector<8x256xf32>, vector<256x256xf32>, vector<8x256xf32> -> vector<8x256xf32>
    %c0_3 = arith.constant 0 : index
    %c0_4 = arith.constant 0 : index
    %3 = vector.load %arg3[%c0_3, %c0_4] : memref<8x256xf32, #tpu.memory_space<vmem>>, vector<8x256xf32>
    tpu.vector_store %arg3[%c0_3, %c0_4], %2 {strides = array<i32>} : memref<8x256xf32, #tpu.memory_space<vmem>>, vector<8x256xf32>,
    return
  }
  func.func @transform_0(%arg0: i32) -> (i32, i32) {
    %c0_i32 = arith.constant 0 : i32
    %c0_i32_0 = arith.constant 0 : i32
    %c0_i32_1 = arith.constant 0 : i32
    return %c0_i32, %c0_i32_0 : i32, i32
  }
  func.func @transform_1(%arg0: i32) -> (i32, i32) {
    %c0_i32 = arith.constant 0 : i32
    %c0_i32_0 = arith.constant 0 : i32
    return %arg0, %c0_i32 : i32, i32
  }
  func.func @transform_2(%arg0: i32) -> (i32, i32) {
    %c0_i32 = arith.constant 0 : i32
    %c0_i32_0 = arith.constant 0 : i32
    return %arg0, %c0_i32 : i32, i32
  }
}

</mosaic_0001>

<llo_original>
// kernel: tpu_custom_call.1
$region0: #{tpu_custom_call.1}
  #allocation0 [shape = 'u32[]', space=smem, size = 0x4, offset = 0x4, fixed_abs, tag = 'smem constant byte address 0x4 - core index']
  #allocation1 [shape = 'u32[144,128]{1,0:T(1,128)}', space=vmem, size = 0x12000, scoped, tag = 'internal scratch']
  %s0 = inlined_call_operand.hbm [shape: f32[256,256], index: 0, kind: input, shape index: {}]
  %s1 = inlined_call_operand.hbm [shape: f32[8,256], index: 1, kind: input, shape index: {}]
  %s2 = inlined_call_operand.hbm [shape: f32[8,256], index: 2, kind: output, shape index: {}]
  %s3 = sld [smem:[#allocation0]]
  $region26: #{tpu_custom_call.1} parent=0
    _
  %s5 = ssub.s32 1, %s3
  %s6 = scalar_select 0, %s5, %s3
  $region1: #{tpu_custom_call.1} parent=0
    #allocation2 [shape = 'u8[262144]{0}', space=vmem, size = 0x40000, scoped, tag = 'input window, operand 0, single buffered']
    #allocation3 [shape = 's32[1]{0}', space=sflag, size = 0x4, scoped, tag = 'scoped memory for tpu_custom_call.1']
    #allocation4 [shape = 's32[1]{0}', space=sflag, size = 0x4, scoped, tag = 'scoped memory for tpu_custom_call.1']
    #allocation5 [shape = 'u8[8192]{0}', space=vmem, size = 0x2000, scoped, tag = 'input window, operand 1, single buffered']
    #allocation6 [shape = 's32[1]{0}', space=sflag, size = 0x4, scoped, tag = 'scoped memory for tpu_custom_call.1']
    #allocation7 [shape = 'u8[8192]{0}', space=vmem, size = 0x2000, scoped, tag = 'output window, operand 0, single buffered']
    %7 = vsyncpa [#allocation3], 0
    %8 = vsyncpa [#allocation6], 0
    %9 = vsyncpa [#allocation4], 0
    // Predicated region
    $region2: #{tpu_custom_call.1} parent=1 // pred_check
      _
    $region3: #{tpu_custom_call.1} parent=1 // pred_check_branch
      %11 = sbr.rel (0) target = $region5
    $region4: #{tpu_custom_call.1} parent=1 // pred_region
      %s13 = ssub.s32 8192, 8192
      %14 = vsyncadd [#allocation3], %s13
      %s15 = sshll.u32 [#allocation2], 4
      %s16 = int_to_ptr.vmem [resolvable:$true] %s15
      %21 = dma.hbm_to_vmem [thread:$0]  %s0, 8192, %s16, [#allocation3], 256, 256, 16
    $region5: #{tpu_custom_call.1} parent=1 // pred_fallthru
      _
    // Predicated region
    $region6: #{tpu_custom_call.1} parent=1 // pred_check
      _
    $region7: #{tpu_custom_call.1} parent=1 // pred_check_branch
      %23 = sbr.rel (0) target = $region9
    $region8: #{tpu_custom_call.1} parent=1 // pred_region
      %s25 = ssub.s32 256, 256
      %26 = vsyncadd [#allocation6], %s25
      %s28 = sshll.u32 [#allocation5], 4
      %s29 = int_to_ptr.vmem [resolvable:$true] %s28
      %31 = dma.hbm_to_vmem [thread:$0]  %s1, 256, %s29, [#allocation6]
    $region9: #{tpu_custom_call.1} parent=1 // pred_fallthru
      _
    // Predicated region
    $region10: #{tpu_custom_call.1} parent=1 // pred_check
      _
    $region11: #{tpu_custom_call.1} parent=1 // pred_check_branch
      %33 = sbr.rel (0) target = $region13
    $region12: #{tpu_custom_call.1} parent=1 // pred_region
      %34 = dma.done [#allocation3], 8192
    $region13: #{tpu_custom_call.1} parent=1 // pred_fallthru
      _
    // Predicated region
    $region14: #{tpu_custom_call.1} parent=1 // pred_check
      _
    $region15: #{tpu_custom_call.1} parent=1 // pred_check_branch
      %36 = sbr.rel (0) target = $region17
    $region16: #{tpu_custom_call.1} parent=1 // pred_region
      %37 = dma.done [#allocation6], 256
    $region17: #{tpu_custom_call.1} parent=1 // pred_fallthru
      _
    %v38 = vld [vmem:[#allocation5] sm:$0xff]
    %v39 = vld [vmem:[#allocation5 + $0x8] sm:$0xff]
    %v40 = vld [vmem:[#allocation2] sm:$0xff]
    %v41 = vld [vmem:[#allocation2 + $0x8] sm:$0xff]
    %v42 = vld [vmem:[#allocation2 + $0x10] sm:$0xff]
    %v43 = vld [vmem:[#allocation2 + $0x18] sm:$0xff]
    %v44 = vld [vmem:[#allocation2 + $0x20] sm:$0xff]
    %v45 = vld [vmem:[#allocation2 + $0x28] sm:$0xff]
    %v46 = vld [vmem:[#allocation2 + $0x30] sm:$0xff]
    %v47 = vld [vmem:[#allocation2 + $0x38] sm:$0xff]
    %v48 = vld [vmem:[#allocation2 + $0x40] sm:$0xff]
    %v49 = vld [vmem:[#allocation2 + $0x48] sm:$0xff]
    %v50 = vld [vmem:[#allocation2 + $0x50] sm:$0xff]
    %v51 = vld [vmem:[#allocation2 + $0x58] sm:$0xff]
    %v52 = vld [vmem:[#allocation2 + $0x60] sm:$0xff]
    %v53 = vld [vmem:[#allocation2 + $0x68] sm:$0xff]
    %v54 = vld [vmem:[#allocation2 + $0x70] sm:$0xff]
    %v55 = vld [vmem:[#allocation2 + $0x78] sm:$0xff]
    %v56 = vld [vmem:[#allocation2 + $0x80] sm:$0xff]
    %v57 = vld [vmem:[#allocation2 + $0x88] sm:$0xff]
    %v58 = vld [vmem:[#allocation2 + $0x90] sm:$0xff]
    %v59 = vld [vmem:[#allocation2 + $0x98] sm:$0xff]
    %v60 = vld [vmem:[#allocation2 + $0xa0] sm:$0xff]
    %v61 = vld [vmem:[#allocation2 + $0xa8] sm:$0xff]
    %v62 = vld [vmem:[#allocation2 + $0xb0] sm:$0xff]
    %v63 = vld [vmem:[#allocation2 + $0xb8] sm:$0xff]
    %v64 = vld [vmem:[#allocation2 + $0xc0] sm:$0xff]
    %v65 = vld [vmem:[#allocation2 + $0xc8] sm:$0xff]
    %v66 = vld [vmem:[#allocation2 + $0xd0] sm:$0xff]
    %v67 = vld [vmem:[#allocation2 + $0xd8] sm:$0xff]
    %v68 = vld [vmem:[#allocation2 + $0xe0] sm:$0xff]
    %v69 = vld [vmem:[#allocation2 + $0xe8] sm:$0xff]
    %v70 = vld [vmem:[#allocation2 + $0xf0] sm:$0xff]
    %v71 = vld [vmem:[#allocation2 + $0xf8] sm:$0xff]
    %v72 = vld [vmem:[#allocation2 + $0x100] sm:$0xff]
    %v73 = vld [vmem:[#allocation2 + $0x108] sm:$0xff]
    %v74 = vld [vmem:[#allocation2 + $0x110] sm:$0xff]
    %v75 = vld [vmem:[#allocation2 + $0x118] sm:$0xff]
    %v76 = vld [vmem:[#allocation2 + $0x120] sm:$0xff]
    %v77 = vld [vmem:[#allocation2 + $0x128] sm:$0xff]
    %v78 = vld [vmem:[#allocation2 + $0x130] sm:$0xff]
    %v79 = vld [vmem:[#allocation2 + $0x138] sm:$0xff]
    %v80 = vld [vmem:[#allocation2 + $0x140] sm:$0xff]
    %v81 = vld [vmem:[#allocation2 + $0x148] sm:$0xff]
    %v82 = vld [vmem:[#allocation2 + $0x150] sm:$0xff]
    %v83 = vld [vmem:[#allocation2 + $0x158] sm:$0xff]
    %v84 = vld [vmem:[#allocation2 + $0x160] sm:$0xff]
    %v85 = vld [vmem:[#allocation2 + $0x168] sm:$0xff]
    %v86 = vld [vmem:[#allocation2 + $0x170] sm:$0xff]
    %v87 = vld [vmem:[#allocation2 + $0x178] sm:$0xff]
    %v88 = vld [vmem:[#allocation2 + $0x180] sm:$0xff]
    %v89 = vld [vmem:[#allocation2 + $0x188] sm:$0xff]
    %v90 = vld [vmem:[#allocation2 + $0x190] sm:$0xff]
    %v91 = vld [vmem:[#allocation2 + $0x198] sm:$0xff]
    %v92 = vld [vmem:[#allocation2 + $0x1a0] sm:$0xff]
    %v93 = vld [vmem:[#allocation2 + $0x1a8] sm:$0xff]
    %v94 = vld [vmem:[#allocation2 + $0x1b0] sm:$0xff]
    %v95 = vld [vmem:[#allocation2 + $0x1b8] sm:$0xff]
    %v96 = vld [vmem:[#allocation2 + $0x1c0] sm:$0xff]
    %v97 = vld [vmem:[#allocation2 + $0x1c8] sm:$0xff]
    %v98 = vld [vmem:[#allocation2 + $0x1d0] sm:$0xff]
    %v99 = vld [vmem:[#allocation2 + $0x1d8] sm:$0xff]
    %v100 = vld [vmem:[#allocation2 + $0x1e0] sm:$0xff]
    %v101 = vld [vmem:[#allocation2 + $0x1e8] sm:$0xff]
    %v102 = vld [vmem:[#allocation2 + $0x1f0] sm:$0xff]
    %v103 = vld [vmem:[#allocation2 + $0x1f8] sm:$0xff]
    %104 = vmatprep.subr.mxu0 %v71
    %105 = vmatpush1.msra.mxu0 %v70
    %106 = vmatprep.subr.mxu0 %v69
    %107 = vmatpush1.msra.mxu0 %v68
    %108 = vmatprep.subr.mxu0 %v67
    %109 = vmatpush1.msra.mxu0 %v66
    %110 = vmatprep.subr.mxu0 %v65
    %111 = vmatpush1.msra.mxu0 %v64
    %112 = vmatprep.subr.mxu0 %v63
    %113 = vmatpush1.msra.mxu0 %v62
    %114 = vmatprep.subr.mxu0 %v61
    %115 = vmatpush1.msra.mxu0 %v60
    %116 = vmatprep.subr.mxu0 %v59
    %117 = vmatpush1.msra.mxu0 %v58
    %118 = vmatprep.subr.mxu0 %v57
    %119 = vmatpush1.msra.mxu0 %v56
    %120 = vmatprep.subr.mxu0 %v55
    %121 = vmatpush1.msra.mxu0 %v54
    %122 = vmatprep.subr.mxu0 %v53
    %123 = vmatpush1.msra.mxu0 %v52
    %124 = vmatprep.subr.mxu0 %v51
    %125 = vmatpush1.msra.mxu0 %v50
    %126 = vmatprep.subr.mxu0 %v49
    %127 = vmatpush1.msra.mxu0 %v48
    %128 = vmatprep.subr.mxu0 %v47
    %129 = vmatpush1.msra.mxu0 %v46
    %130 = vmatprep.subr.mxu0 %v45
    %131 = vmatpush1.msra.mxu0 %v44
    %132 = vmatprep.subr.mxu0 %v43
    %133 = vmatpush1.msra.mxu0 %v42
    %134 = vmatprep.subr.mxu0 %v41
    %135 = vmatpush1.msra.mxu0 %v40
    %136 = vmatprep.subr.mxu0 %v103
    %137 = vmatpush2.msra.mxu0 %v102
    %138 = vmatprep.subr.mxu0 %v101
    %139 = vmatpush2.msra.mxu0 %v100
    %140 = vmatprep.subr.mxu0 %v99
    %141 = vmatpush2.msra.mxu0 %v98
    %142 = vmatprep.subr.mxu0 %v97
    %143 = vmatpush2.msra.mxu0 %v96
    %144 = vmatprep.subr.mxu0 %v95
    %145 = vmatpush2.msra.mxu0 %v94
    %146 = vmatprep.subr.mxu0 %v93
    %147 = vmatpush2.msra.mxu0 %v92
    %148 = vmatprep.subr.mxu0 %v91
    %149 = vmatpush2.msra.mxu0 %v90
    %150 = vmatprep.subr.mxu0 %v89
    %151 = vmatpush2.msra.mxu0 %v88
    %152 = vmatprep.subr.mxu0 %v87
    %153 = vmatpush2.msra.mxu0 %v86
    %154 = vmatprep.subr.mxu0 %v85
    %155 = vmatpush2.msra.mxu0 %v84
    %156 = vmatprep.subr.mxu0 %v83
    %157 = vmatpush2.msra.mxu0 %v82
    %158 = vmatprep.subr.mxu0 %v81
    %159 = vmatpush2.msra.mxu0 %v80
    %160 = vmatprep.subr.mxu0 %v79
    %161 = vmatpush2.msra.mxu0 %v78
    %162 = vmatprep.subr.mxu0 %v77
    %163 = vmatpush2.msra.mxu0 %v76
    %164 = vmatprep.subr.mxu0 %v75
    %165 = vmatpush2.msra.mxu0 %v74
    %166 = vmatprep.subr.mxu0 %v73
    %167 = vmatpush2.msra.mxu0 %v72
    %168 = vmatprep.mubr.f32.mxu0 %v39
    %169 = vmatmul.mubr.f32.gmra.mxu0 %v38
    %v170 = vpop.f32.mrf.mxu0
    %v171 = vadd.f32 0.0, %v170
    %v172 = vpop.f32.mrf.mxu0
    %v173 = vadd.f32 0.0, %v172
    %174 = vdwg.mxu0
    %175 = vst [vmem:[#allocation7] sm:$0xff] %v171
    %176 = vst [vmem:[#allocation7 + $0x8] sm:$0xff] %v173
    // Predicated region
    $region18: #{tpu_custom_call.1} parent=1 // pred_check
      _
    $region19: #{tpu_custom_call.1} parent=1 // pred_check_branch
      %178 = sbr.rel (0) target = $region21
    $region20: #{tpu_custom_call.1} parent=1 // pred_region
      %s180 = ssub.s32 256, 256
      %181 = vsyncadd [#allocation4], %s180
      %s183 = sshll.u32 [#allocation7], 4
      %s184 = int_to_ptr.vmem [resolvable:$true] %s183
      %186 = dma.vmem_to_hbm [thread:$0]  %s184, 256, %s2, [#allocation4]
    $region21: #{tpu_custom_call.1} parent=1 // pred_fallthru
      _
    // Predicated region
    $region22: #{tpu_custom_call.1} parent=1 // pred_check
      _
    $region23: #{tpu_custom_call.1} parent=1 // pred_check_branch
      %188 = sbr.rel (0) target = $region25
    $region24: #{tpu_custom_call.1} parent=1 // pred_region
      %189 = dma.done [#allocation4], 256
    $region25: #{tpu_custom_call.1} parent=1 // pred_fallthru
      _
    %190 = vsyncpa [#allocation3], 1
    %191 = vsyncpa [#allocation6], 1
    %192 = vsyncpa [#allocation4], 1

</llo_original>
